<compile_context>
chip_gen: v5e
topology: v5e:2x2
jax: 0.10.0
libtpu: 0.0.40
codegen_flags: <defaults>
</compile_context>

<pallas_src>
import jax
import jax.numpy as jnp
import numpy as np
from jax.experimental import pallas as pl
from jax.experimental.pallas import tpu as pltpu


def _conv_embed_kernel(x_ref, w_ref, b_ref, o_ref):
    # x_ref: (1, L, Cin)   w_ref: (3, Cin, Cout)   b_ref: (1, Cout)
    # o_ref: (1, L, Cout)
    x = x_ref[0]                                   # (L, Cin)
    L = x.shape[0]
    x_prev = pltpu.roll(x, shift=1, axis=0)        # x_prev[t] = x[(t-1) % L]
    x_next = pltpu.roll(x, shift=L - 1, axis=0)    # x_next[t] = x[(t+1) % L]
    acc = jnp.dot(x_prev, w_ref[0], preferred_element_type=jnp.float32)
    acc = acc + jnp.dot(x, w_ref[1], preferred_element_type=jnp.float32)
    acc = acc + jnp.dot(x_next, w_ref[2], preferred_element_type=jnp.float32)
    acc = acc + b_ref[...]                         # (1, Cout) broadcasts over rows
    o_ref[0] = acc.astype(o_ref.dtype)


def informer_convolutional_embedding(x: jax.Array,
                                     weight: jax.Array,
                                     bias: jax.Array) -> jax.Array:
    """x: (B, L, Cin); weight: (Cout, Cin, 3) [torch Conv1d layout]; bias: (Cout,).
    Returns (B, L, Cout) float32, matching InformerConvolutionalEmbedding.forward."""
    B, L, Cin = x.shape
    Cout = weight.shape[0]
    # (Cout, Cin, 3) -> (3, Cin, Cout): w_stack[k] = weight[:, :, k].T
    w_stack = jnp.transpose(weight, (2, 1, 0)).astype(jnp.float32)
    bias2d = bias.reshape(1, Cout).astype(jnp.float32)

    return pl.pallas_call(
        _conv_embed_kernel,
        out_shape=jax.ShapeDtypeStruct((B, L, Cout), jnp.float32),
        grid=(B,),
        in_specs=[
            pl.BlockSpec((1, L, Cin), lambda b: (b, 0, 0)),
            pl.BlockSpec((3, Cin, Cout), lambda b: (0, 0, 0)),
            pl.BlockSpec((1, Cout), lambda b: (0, 0)),
        ],
        out_specs=pl.BlockSpec((1, L, Cout), lambda b: (b, 0, 0)),
        compiler_params=pltpu.CompilerParams(
            dimension_semantics=("parallel",)),
    )(x.astype(jnp.float32), w_stack, bias2d)


def _reference_conv_embedding(x: np.ndarray, weight: np.ndarray,
                              bias: np.ndarray) -> np.ndarray:
    # numpy replica of Conv1d(k=3, padding=1, padding_mode='circular') over the
    # sequence axis, i.e. the torch module's forward.
    B, L, Cin = x.shape
    Cout = weight.shape[0]
    out = np.zeros((B, L, Cout), dtype=np.float32)
    for t in range(L):
        xm1 = x[:, (t - 1) % L, :]
        x0 = x[:, t, :]
        xp1 = x[:, (t + 1) % L, :]
        out[:, t, :] = (xm1 @ weight[:, :, 0].T
                        + x0 @ weight[:, :, 1].T
                        + xp1 @ weight[:, :, 2].T
                        + bias)
    return out


if __name__ == "__main__":
    key = jax.random.PRNGKey(0)
    k_x, k_w, k_b = jax.random.split(key, 3)

    batch, seq_len = 2, 8
    input_features, output_features = 4, 32

    x = jax.random.normal(k_x, (batch, seq_len, input_features), dtype=jnp.float32)

    # Deterministic stand-ins for the torch parameters:
    # kaiming_normal_(fan_in, leaky_relu) weight + default Conv1d uniform bias.
    fan_in = input_features * 3
    gain = float(np.sqrt(2.0 / (1.0 + 0.01 ** 2)))
    w_std = gain / float(np.sqrt(fan_in))
    weight = jax.random.normal(
        k_w, (output_features, input_features, 3), dtype=jnp.float32) * w_std
    bound = 1.0 / float(np.sqrt(fan_in))
    bias = jax.random.uniform(
        k_b, (output_features,), dtype=jnp.float32, minval=-bound, maxval=bound)

    out = informer_convolutional_embedding(x, weight, bias)
    out = jax.block_until_ready(out)

    ref = _reference_conv_embedding(np.asarray(x), np.asarray(weight),
                                    np.asarray(bias))
    assert out.shape == (batch, seq_len, output_features), out.shape
    np.testing.assert_allclose(np.asarray(out), ref, rtol=1e-4, atol=1e-5)

    print("KERNEL_OK")
</pallas_src>

<mosaic_0001>
module attributes {stable_mosaic.version = 11 : i64} {
  func.func @_conv_embed_kernel(%arg0: i32, %arg1: memref<1x8x4xf32, #tpu.memory_space<vmem>>, %arg2: memref<3x4x32xf32, #tpu.memory_space<vmem>>, %arg3: memref<1x32xf32, #tpu.memory_space<vmem>>, %arg4: memref<1x8x32xf32, #tpu.memory_space<vmem>>) attributes {dimension_semantics = [#tpu.dimension_semantics<parallel>], iteration_bounds = array<i64: 2>, scalar_prefetch = 0 : i64, scratch_operands = 0 : i64, tpu.core_type = #tpu.core_type<tc>, window_params = [{transform_indices = @transform_0, window_bounds = array<i64: 1, 8, 4>}, {pipeline_mode = #tpu.pipeline_mode<synchronous>, transform_indices = @transform_1, window_bounds = array<i64: 3, 4, 32>}, {pipeline_mode = #tpu.pipeline_mode<synchronous>, transform_indices = @transform_2, window_bounds = array<i64: 1, 32>}, {transform_indices = @transform_3, window_bounds = array<i64: 1, 8, 32>}]} {
    %c0 = arith.constant 0 : index
    %c0_0 = arith.constant 0 : index
    %c0_1 = arith.constant 0 : index
    %0 = vector.load %arg1[%c0, %c0_0, %c0_1] : memref<1x8x4xf32, #tpu.memory_space<vmem>>, vector<1x8x4xf32>
    %1 = vector.shape_cast %0 : vector<1x8x4xf32> to vector<8x4xf32>
    %c1_i32 = arith.constant 1 : i32
    %2 = tpu.dynamic_rotate %1 by %c1_i32 dim 0 : vector<8x4xf32>, i32 -> vector<8x4xf32>
    %c7_i32 = arith.constant 7 : i32
    %3 = tpu.dynamic_rotate %1 by %c7_i32 dim 0 : vector<8x4xf32>, i32 -> vector<8x4xf32>
    %c0_2 = arith.constant 0 : index
    %c0_3 = arith.constant 0 : index
    %c0_4 = arith.constant 0 : index
    %4 = vector.load %arg2[%c0_2, %c0_3, %c0_4] : memref<3x4x32xf32, #tpu.memory_space<vmem>>, vector<1x4x32xf32>
    %5 = vector.shape_cast %4 : vector<1x4x32xf32> to vector<4x32xf32>
    %cst = arith.constant dense<0.000000e+00> : vector<8x32xf32>
    %6 = tpu.matmul %2, %5, %cst {dimension_numbers = #tpu.dot_dimension_numbers<[1], [0], [0], [1], [0, 0, 1, 1], [], []>} : vector<8x4xf32>, vector<4x32xf32>, vector<8x32xf32> -> vector<8x32xf32>
    %c1 = arith.constant 1 : index
    %c0_5 = arith.constant 0 : index
    %c0_6 = arith.constant 0 : index
    %7 = vector.load %arg2[%c1, %c0_5, %c0_6] : memref<3x4x32xf32, #tpu.memory_space<vmem>>, vector<1x4x32xf32>
    %8 = vector.shape_cast %7 : vector<1x4x32xf32> to vector<4x32xf32>
    %cst_7 = arith.constant dense<0.000000e+00> : vector<8x32xf32>
    %9 = tpu.matmul %1, %8, %cst_7 {dimension_numbers = #tpu.dot_dimension_numbers<[1], [0], [0], [1], [0, 0, 1, 1], [], []>} : vector<8x4xf32>, vector<4x32xf32>, vector<8x32xf32> -> vector<8x32xf32>
    %10 = arith.addf %6, %9 : vector<8x32xf32>
    %c2 = arith.constant 2 : index
    %c0_8 = arith.constant 0 : index
    %c0_9 = arith.constant 0 : index
    %11 = vector.load %arg2[%c2, %c0_8, %c0_9] : memref<3x4x32xf32, #tpu.memory_space<vmem>>, vector<1x4x32xf32>
    %12 = vector.shape_cast %11 : vector<1x4x32xf32> to vector<4x32xf32>
    %cst_10 = arith.constant dense<0.000000e+00> : vector<8x32xf32>
    %13 = tpu.matmul %3, %12, %cst_10 {dimension_numbers = #tpu.dot_dimension_numbers<[1], [0], [0], [1], [0, 0, 1, 1], [], []>} : vector<8x4xf32>, vector<4x32xf32>, vector<8x32xf32> -> vector<8x32xf32>
    %14 = arith.addf %10, %13 : vector<8x32xf32>
    %c0_11 = arith.constant 0 : index
    %c0_12 = arith.constant 0 : index
    %15 = vector.load %arg3[%c0_11, %c0_12] : memref<1x32xf32, #tpu.memory_space<vmem>>, vector<1x32xf32>
    %16 = vector.broadcast %15 : vector<1x32xf32> to vector<8x32xf32>
    %17 = arith.addf %14, %16 : vector<8x32xf32>
    %c0_13 = arith.constant 0 : index
    %c0_14 = arith.constant 0 : index
    %c0_15 = arith.constant 0 : index
    %18 = vector.load %arg4[%c0_13, %c0_14, %c0_15] : memref<1x8x32xf32, #tpu.memory_space<vmem>>, vector<1x8x32xf32>
    %19 = vector.shape_cast %18 : vector<1x8x32xf32> to vector<8x32xf32>
    %20 = vector.shape_cast %17 : vector<8x32xf32> to vector<1x8x32xf32>
    tpu.vector_store %arg4[%c0_13, %c0_14, %c0_15], %20 {strides = array<i32>} : memref<1x8x32xf32, #tpu.memory_space<vmem>>, vector<1x8x32xf32>,
    return
  }
  func.func @transform_0(%arg0: i32) -> (i32, i32, i32) {
    %c0_i32 = arith.constant 0 : i32
    %c0_i32_0 = arith.constant 0 : i32
    %c0_i32_1 = arith.constant 0 : i32
    return %arg0, %c0_i32, %c0_i32_0 : i32, i32, i32
  }
  func.func @transform_1(%arg0: i32) -> (i32, i32, i32) {
    %c0_i32 = arith.constant 0 : i32
    %c0_i32_0 = arith.constant 0 : i32
    %c0_i32_1 = arith.constant 0 : i32
    %c0_i32_2 = arith.constant 0 : i32
    return %c0_i32, %c0_i32_0, %c0_i32_1 : i32, i32, i32
  }
  func.func @transform_2(%arg0: i32) -> (i32, i32) {
    %c0_i32 = arith.constant 0 : i32
    %c0_i32_0 = arith.constant 0 : i32
    %c0_i32_1 = arith.constant 0 : i32
    return %c0_i32, %c0_i32_0 : i32, i32
  }
  func.func @transform_3(%arg0: i32) -> (i32, i32, i32) {
    %c0_i32 = arith.constant 0 : i32
    %c0_i32_0 = arith.constant 0 : i32
    %c0_i32_1 = arith.constant 0 : i32
    return %arg0, %c0_i32, %c0_i32_0 : i32, i32, i32
  }
}

</mosaic_0001>

<llo_original>
// kernel: tpu_custom_call.1
$region0: #{tpu_custom_call.1}
  #allocation0 [shape = 'u32[]', space=smem, size = 0x4, offset = 0x4, fixed_abs, tag = 'smem constant byte address 0x4 - core index']
  #allocation1 [shape = 'u32[72,128]{1,0:T(1,128)}', space=vmem, size = 0x9000, scoped, tag = 'internal scratch']
  %s0 = inlined_call_operand.vmem [shape: f32[2,8,4], index: 0, kind: input, shape index: {}]
  %s1 = inlined_call_operand.vmem [shape: f32[3,4,32], index: 1, kind: input, shape index: {}]
  %s2 = inlined_call_operand.vmem [shape: f32[1,32], index: 2, kind: input, shape index: {}]
  %s3 = inlined_call_operand.hbm [shape: f32[2,8,32], index: 3, kind: output, shape index: {}]
  %s4 = sld [smem:[#allocation0]]
  $region45: #{tpu_custom_call.1} parent=0
    _
  %s6 = ssub.s32 1, %s4
  %s7 = scalar_select 0, %s6, %s4
  $region1: #{tpu_custom_call.1} parent=0
    #allocation2 [shape = 'u8[8192]{0}', space=vmem, size = 0x2000, scoped, tag = 'output window, operand 0']
    #allocation3 [shape = 's32[2]{0}', space=sflag, size = 0x8, scoped, tag = 'scoped memory for tpu_custom_call.1']
    %8 = vsyncpa [#allocation3], 0
    %s9 = scalar_lea.sflag [#allocation3], 1
    %10 = vsyncpa %s9, 0
    loop: start=0, step=1, limit=4
    $region2: #{tpu_custom_call.1} parent=1 // loop_pre_header
      _
    $region3: #{tpu_custom_call.1} parent=1 // loop_header
      %s12 = sphi 0, %s16
      %p13 = scmp.ge.s32.totalorder %s12, 4
      %s22 = sphi 0, %s24
      %s25 = sphi 0, %s22
      %s26 = sphi 0, %s25
      %s42 = sphi 0, %s26
      %s46 = sphi 0, %s46
      %s48 = sphi 0, %s46
      %s49 = sphi 0, %s48
      %s63 = sphi 0, %s49
      %s67 = sphi 0, %s67
      %s69 = sphi 0, %s67
      %s70 = sphi 0, %s69
      %s84 = sphi 0, %s70
      %s90 = sphi 0, %s92
      %s93 = sphi 0, %s90
      %s94 = sphi 0, %s93
      %s110 = sphi 0, %s94
    $region4: #{tpu_custom_call.1} parent=1 // loop_header_branch
      %15 = sbr.rel (%p13) target = $region8
    $region5: #{tpu_custom_call.1} parent=1 // loop_body
      %s17 = ssub.s32 %s12, 1
      %s18 = ssub.s32 %s12, 2
      %s19 = sadd.s32 %s12, 1
      %s20 = ssub.s32 %s12, %s19
      %p21 = scmp.eq.s32.totalorder %s20, 0
      %s23 = sadd.s32 %s22, 1
      %s24 = scalar_select %p21, %s22, %s23
      %p27 = pneg %p21
      %p28 = scmp.eq.s32.totalorder %s12, 1
      %p29 = por %p27, %p28
      %p30 = scmp.ne.s32.totalorder %s22, %s25
      %p31 = scmp.eq.s32.totalorder %s12, 0
      %p32 = por %p30, %p31
      %p33 = scmp.ne.s32.totalorder %s22, %s25
      %p34 = scmp.eq.s32.totalorder %s17, 1
      %p35 = por %p33, %p34
      %p36 = scmp.ne.s32.totalorder %s25, %s26
      %p37 = scmp.eq.s32.totalorder %s17, 0
      %p38 = por %p36, %p37
      %p39 = scmp.ne.s32.totalorder %s25, %s26
      %p40 = scmp.eq.s32.totalorder %s18, 1
      %p41 = por %p39, %p40
      %p43 = scmp.ne.s32.totalorder %s26, %s42
      %p44 = scmp.eq.s32.totalorder %s18, 0
      %p45 = por %p43, %p44
      %s47 = sadd.s32 %s46, 1
      %p50 = scmp.eq.s32.totalorder %s12, 1
      %p51 = scmp.ne.s32.totalorder %s46, %s48
      %p52 = scmp.eq.s32.totalorder %s12, 0
      %p53 = por %p51, %p52
      %p54 = scmp.ne.s32.totalorder %s46, %s48
      %p55 = scmp.eq.s32.totalorder %s17, 1
      %p56 = por %p54, %p55
      %p57 = scmp.ne.s32.totalorder %s48, %s49
      %p58 = scmp.eq.s32.totalorder %s17, 0
      %p59 = por %p57, %p58
      %p60 = scmp.ne.s32.totalorder %s48, %s49
      %p61 = scmp.eq.s32.totalorder %s18, 1
      %p62 = por %p60, %p61
      %p64 = scmp.ne.s32.totalorder %s49, %s63
      %p65 = scmp.eq.s32.totalorder %s18, 0
      %p66 = por %p64, %p65
      %s68 = sadd.s32 %s67, 1
      %p71 = scmp.eq.s32.totalorder %s12, 1
      %p72 = scmp.ne.s32.totalorder %s67, %s69
      %p73 = scmp.eq.s32.totalorder %s12, 0
      %p74 = por %p72, %p73
      %p75 = scmp.ne.s32.totalorder %s67, %s69
      %p76 = scmp.eq.s32.totalorder %s17, 1
      %p77 = por %p75, %p76
      %p78 = scmp.ne.s32.totalorder %s69, %s70
      %p79 = scmp.eq.s32.totalorder %s17, 0
      %p80 = por %p78, %p79
      %p81 = scmp.ne.s32.totalorder %s69, %s70
      %p82 = scmp.eq.s32.totalorder %s18, 1
      %p83 = por %p81, %p82
      %p85 = scmp.ne.s32.totalorder %s70, %s84
      %p86 = scmp.eq.s32.totalorder %s18, 0
      %p87 = por %p85, %p86
      %s88 = ssub.s32 %s12, %s19
      %p89 = scmp.eq.s32.totalorder %s88, 0
      %s91 = sadd.s32 %s90, 1
      %s92 = scalar_select %p89, %s90, %s91
      %p95 = pneg %p89
      %p96 = scmp.eq.s32.totalorder %s12, 1
      %p97 = por %p95, %p96
      %p98 = scmp.ne.s32.totalorder %s90, %s93
      %p99 = scmp.eq.s32.totalorder %s12, 0
      %p100 = por %p98, %p99
      %p101 = scmp.ne.s32.totalorder %s90, %s93
      %p102 = scmp.eq.s32.totalorder %s17, 1
      %p103 = por %p101, %p102
      %p104 = scmp.ne.s32.totalorder %s93, %s94
      %p105 = scmp.eq.s32.totalorder %s17, 0
      %p106 = por %p104, %p105
      %p107 = scmp.ne.s32.totalorder %s93, %s94
      %p108 = scmp.eq.s32.totalorder %s18, 1
      %p109 = por %p107, %p108
      %p111 = scmp.ne.s32.totalorder %s94, %s110
      %p112 = scmp.eq.s32.totalorder %s18, 0
      %p113 = por %p111, %p112
      %p114 = scmp.le.s32.totalorder 1, %s12
      %p115 = scmp.lt.s32.totalorder %s12, 3
      %p116 = pnand %p114, %p115
      %p117 = pneg %p116
      // Predicated region
      $region9: #{tpu_custom_call.1} parent=5 // pred_check
        _
      $region10: #{tpu_custom_call.1} parent=5 // pred_check_branch
        %119 = sbr.rel (%p116) target = $region12
      $region11: #{tpu_custom_call.1} parent=5 // pred_region
        %s120 = ssub.s32 %s12, 1
        // Predicated region
        $region13: #{tpu_custom_call.1} parent=11 // pred_check
          %p121 = pneg %p59
        $region14: #{tpu_custom_call.1} parent=11 // pred_check_branch
          %123 = sbr.rel (%p121) target = $region16
        $region15: #{tpu_custom_call.1} parent=11 // pred_region
          _
        $region16: #{tpu_custom_call.1} parent=11 // pred_fallthru
          _
        // Predicated region
        $region17: #{tpu_custom_call.1} parent=11 // pred_check
          %p124 = pneg %p80
        $region18: #{tpu_custom_call.1} parent=11 // pred_check_branch
          %126 = sbr.rel (%p124) target = $region20
        $region19: #{tpu_custom_call.1} parent=11 // pred_region
          _
        $region20: #{tpu_custom_call.1} parent=11 // pred_fallthru
          _
      $region12: #{tpu_custom_call.1} parent=5 // pred_fallthru
        _
      %p127 = scmp.lt.s32.totalorder %s12, 2
      // Predicated region
      $region21: #{tpu_custom_call.1} parent=5 // pred_check
        %p128 = pneg %p127
      $region22: #{tpu_custom_call.1} parent=5 // pred_check_branch
        %130 = sbr.rel (%p128) target = $region24
      $region23: #{tpu_custom_call.1} parent=5 // pred_region
        // Predicated region
        $region25: #{tpu_custom_call.1} parent=23 // pred_check
          %p131 = pneg %p32
        $region26: #{tpu_custom_call.1} parent=23 // pred_check_branch
          %133 = sbr.rel (%p131) target = $region28
        $region27: #{tpu_custom_call.1} parent=23 // pred_region
          %p134 = scmp.lt.s32.totalorder %s12, 1
          %s135 = scalar_select %p134, %s12, 1
          %s136 = smul.addr %s135, 8
          %s137 = scalar_lea.vmem %s0, %s136
        $region28: #{tpu_custom_call.1} parent=23 // pred_fallthru
          _
      $region24: #{tpu_custom_call.1} parent=5 // pred_fallthru
        _
      %p138 = scmp.le.s32.totalorder 1, %s12
      %p139 = scmp.lt.s32.totalorder %s12, 3
      %p140 = pnand %p138, %p139
      %p141 = pneg %p140
      // Predicated region
      $region29: #{tpu_custom_call.1} parent=5 // pred_check
        _
      $region30: #{tpu_custom_call.1} parent=5 // pred_check_branch
        %143 = sbr.rel (%p140) target = $region32
      $region31: #{tpu_custom_call.1} parent=5 // pred_region
        %s144 = ssub.s32 %s12, 1
        %p145 = scmp.lt.s32.totalorder %s17, 1
        %s146 = scalar_select %p145, %s17, 1
        %s147 = smul.addr %s146, 8
        %s148 = scalar_lea.vmem %s0, %s147
        %p149 = pneg %p38
        %p150 = pneg %p35
        %p151 = pneg %p59
        %p152 = pneg %p56
        %p153 = pneg %p80
        %p154 = pneg %p77
        %p155 = pneg %p106
        %p156 = pneg %p103
        %s157 = sand.u32 %s93, 1
        %s158 = scalar_lea.sflag [#allocation3], %s157
        %s159 = sand.u32 %s93, 1
        %s160 = smul.addr %s159, 8
        %s161 = scalar_lea.vmem [#allocation2], %s160
        %p162 = scmp.lt.s32.totalorder %s17, 1
        %s163 = scalar_select %p162, %s17, 1
        %s164 = smul.addr %s163, 8
        %s165 = scalar_lea.vmem %s0, %s164
        %v166 = vld [vmem:[%s165] sm:$0xff]
        %v167 = vrot.slane %v166, 7
        %v168 = vrot.slane %v166, 1
        %v169 = vld [vmem:[%s1] sm:$0xf]
        %s170 = scalar_lea.vmem %s1, 4
        %v171 = vld [vmem:[%s170] sm:$0xf]
        %vm172 = vcmask 31744
        %v174 = vsel %vm172, %v166, 0
        %vm176 = vcmask 1043456
        %v178 = vsel %vm176, %v171, 0
        %180 = vmatpush.msra.mxu0 0.0
        %181 = vmatpush.msra.mxu0 0.0
        %182 = vmatpush.msra.mxu0 0.0
        %183 = vmatpush.msra.mxu0 0.0
        %184 = vmatpush.msra.mxu0 0.0
        %185 = vmatpush.msra.mxu0 0.0
        %186 = vmatpush.msra.mxu0 0.0
        %187 = vmatpush.msra.mxu0 0.0
        %188 = vmatpush.msra.mxu0 0.0
        %189 = vmatpush.msra.mxu0 0.0
        %190 = vmatpush.msra.mxu0 0.0
        %191 = vmatpush.msra.mxu0 0.0
        %192 = vmatpush.msra.mxu0 0.0
        %193 = vmatpush.msra.mxu0 0.0
        %194 = vmatpush.msra.mxu0 0.0
        %195 = vmatpush.msra.mxu0 %v178
        %196 = vmatmul.f32.gmra.mxu0 %v174
        %v197 = vpop.f32.mrf.mxu0
        %v198 = vadd.f32 0.0, %v197
        %199 = vdwg.mxu0
        %v201 = vsel %vm172, %v167, 0
        %v204 = vsel %vm176, %v169, 0
        %206 = vmatpush.msra.mxu0 0.0
        %207 = vmatpush.msra.mxu0 0.0
        %208 = vmatpush.msra.mxu0 0.0
        %209 = vmatpush.msra.mxu0 0.0
        %210 = vmatpush.msra.mxu0 0.0
        %211 = vmatpush.msra.mxu0 0.0
        %212 = vmatpush.msra.mxu0 0.0
        %213 = vmatpush.msra.mxu0 0.0
        %214 = vmatpush.msra.mxu0 0.0
        %215 = vmatpush.msra.mxu0 0.0
        %216 = vmatpush.msra.mxu0 0.0
        %217 = vmatpush.msra.mxu0 0.0
        %218 = vmatpush.msra.mxu0 0.0
        %219 = vmatpush.msra.mxu0 0.0
        %220 = vmatpush.msra.mxu0 0.0
        %221 = vmatpush.msra.mxu0 %v204
        %222 = vmatmul.f32.gmra.mxu0 %v201
        %v223 = vpop.f32.mrf.mxu0
        %v224 = vadd.f32 %v198, %v223
        %225 = vdwg.mxu0
        %s226 = scalar_lea.vmem %s1, 8
        %v227 = vld [vmem:[%s226] sm:$0xf]
        %v229 = vsel %vm172, %v168, 0
        %v232 = vsel %vm176, %v227, 0
        %234 = vmatpush.msra.mxu0 0.0
        %235 = vmatpush.msra.mxu0 0.0
        %236 = vmatpush.msra.mxu0 0.0
        %237 = vmatpush.msra.mxu0 0.0
        %238 = vmatpush.msra.mxu0 0.0
        %239 = vmatpush.msra.mxu0 0.0
        %240 = vmatpush.msra.mxu0 0.0
        %241 = vmatpush.msra.mxu0 0.0
        %242 = vmatpush.msra.mxu0 0.0
        %243 = vmatpush.msra.mxu0 0.0
        %244 = vmatpush.msra.mxu0 0.0
        %245 = vmatpush.msra.mxu0 0.0
        %246 = vmatpush.msra.mxu0 0.0
        %247 = vmatpush.msra.mxu0 0.0
        %248 = vmatpush.msra.mxu0 0.0
        %249 = vmatpush.msra.mxu0 %v232
        %250 = vmatmul.f32.gmra.mxu0 %v229
        %v251 = vpop.f32.mrf.mxu0
        %v252 = vadd.f32 0.0, %v251
        %253 = vdwg.mxu0
        %v254 = vadd.f32 %v224, %v252
        %v255 = vld [vmem:[%s2] sm:$0x1]
        %v257 = vperm.slane %v255, 0
        %v259 = vadd.f32 %v254, %v257
        %vm260 = vcmask 261120
        %261 = vst.msk [vmem:[%s161] sm:$0xff] %vm260, %v259
        %s262 = sand.u32 %s93, 1
        %s263 = scalar_lea.sflag [#allocation3], %s262
        %s264 = sand.u32 %s93, 1
        %s265 = smul.addr %s264, 8
        %s266 = scalar_lea.vmem [#allocation2], %s265
        // Predicated region
        $region33: #{tpu_custom_call.1} parent=31 // pred_check
          %p267 = pneg %p103
        $region34: #{tpu_custom_call.1} parent=31 // pred_check_branch
          %269 = sbr.rel (%p267) target = $region36
        $region35: #{tpu_custom_call.1} parent=31 // pred_region
          %271 = vsyncadd %s263, 0
          %s272 = smul.addr %s17, 8
          %s273 = scalar_lea.hbm %s3, %s272
          %s275 = sshll.u32 %s266, 4
          %s276 = int_to_ptr.vmem [resolvable:$true] %s275
          %s277 = sshll.u32 %s273, 4
          %s278 = int_to_ptr.hbm [resolvable:$true] %s277
          %280 = dma.vmem_to_hbm [thread:$0]  %s276, 128, %s278, %s263
        $region36: #{tpu_custom_call.1} parent=31 // pred_fallthru
          _
      $region32: #{tpu_custom_call.1} parent=5 // pred_fallthru
        _
      %p281 = scmp.le.s32.totalorder 2, %s12
      // Predicated region
      $region37: #{tpu_custom_call.1} parent=5 // pred_check
        %p282 = pneg %p281
      $region38: #{tpu_custom_call.1} parent=5 // pred_check_branch
        %284 = sbr.rel (%p282) target = $region40
      $region39: #{tpu_custom_call.1} parent=5 // pred_region
        %s285 = ssub.s32 %s12, 2
        // Predicated region
        $region41: #{tpu_custom_call.1} parent=39 // pred_check
          %p286 = pneg %p109
        $region42: #{tpu_custom_call.1} parent=39 // pred_check_branch
          %288 = sbr.rel (%p286) target = $region44
        $region43: #{tpu_custom_call.1} parent=39 // pred_region
          %s289 = sand.u32 %s94, 1
          %s290 = scalar_lea.sflag [#allocation3], %s289
          %s291 = sand.u32 %s94, 1
          %s292 = smul.addr %s291, 8
          %s293 = scalar_lea.vmem [#allocation2], %s292
          %295 = dma.done %s290, 128
        $region44: #{tpu_custom_call.1} parent=39 // pred_fallthru
          _
      $region40: #{tpu_custom_call.1} parent=5 // pred_fallthru
        _
    $region6: #{tpu_custom_call.1} parent=1 // loop_footer
      %s16 = sadd.s32 1, %s12
    $region7: #{tpu_custom_call.1} parent=1 // loop_footer_branch
      %11 = sbr.rel target = $region3
    $region8: #{tpu_custom_call.1} parent=1 // loop_exit
      _
    %296 = vsyncpa [#allocation3], 1
    %s297 = scalar_lea.sflag [#allocation3], 1
    %298 = vsyncpa %s297, 1

</llo_original>
